<compile_context>
chip_gen: v6e
topology: v6e:2x2x1
jax: 0.10.0
libtpu: 0.0.40
codegen_flags: <defaults>
</compile_context>

<pallas_src>
import jax
import jax.numpy as jnp
from jax.experimental import pallas as pl
from jax.experimental.pallas import tpu as pltpu

HPAD = 128  # each gate padded to one full 128-lane group


def lstm_regressor_kernel(x_ref, w_ref, aux_ref, out_ref):
    # In-kernel bf16 cast of x; one fused gate matmul:
    # (B, D) bf16 @ (D, 3*128) bf16 -> f32 accumulate.
    x_bf16 = x_ref[...].astype(jnp.bfloat16)
    gates = (jnp.dot(x_bf16, w_ref[...], preferred_element_type=jnp.float32)
             + aux_ref[0:1, :])                       # row 0 = fused bias

    # Static, vreg-aligned 128-lane slices: [ i | g | o ] (forget gate elided).
    i_gate = jax.nn.sigmoid(gates[:, 0:HPAD])
    g_gate = jnp.tanh(gates[:, HPAD:2 * HPAD])
    o_gate = jax.nn.sigmoid(gates[:, 2 * HPAD:3 * HPAD])

    c = i_gate * g_gate              # c0 == 0 -> forget-gate term dropped
    h = o_gate * jnp.tanh(c)         # (B, 128) f32; padded lanes are exactly 0
    # (zero-padded bias -> h padded lanes = 0.5*tanh(0.5*0) = 0; fc weight pads
    #  are also 0, so the reduce below is unaffected by padding.)

    # fc layer as VPU mul + cross-lane reduce (no N=1 MXU push).
    wfc = aux_ref[1:2, 0:HPAD]               # (1, 128) fc weight row
    bfc = aux_ref[1:2, HPAD:HPAD + 1]        # (1, 1)   fc bias
    out_ref[...] = jnp.sum(h * wfc, axis=-1, keepdims=True) + bfc


def lstm_regressor_forward(x_f32, w_packed, aux):
    bsz = x_f32.shape[0]
    vmem = pl.BlockSpec(memory_space=pltpu.MemorySpace.VMEM)
    return pl.pallas_call(
        lstm_regressor_kernel,
        out_shape=jax.ShapeDtypeStruct((bsz, 1), jnp.float32),
        in_specs=[vmem, vmem, vmem],
        out_specs=vmem,
    )(x_f32, w_packed, aux)


def pack_params(w_ih, b_ih, b_hh, w_fc, b_fc):
    """Pack PyTorch LSTM/Linear params into the fused, lane-padded layout.

    Call ONCE at model init; reuse the returned arrays for every forward.
    Returns:
      w_packed : (D, 3*HPAD) bf16   columns = [ W_i | W_g | W_o ], lane-padded
      aux      : (2, 3*HPAD) f32    row 0 = fused bias (b_ih + b_hh) for i|g|o
                                    row 1 = [ fc weights (HPAD lanes) | b_fc | 0... ]
    """
    four_h, _ = w_ih.shape
    h = four_h // 4
    b_sum = (b_ih + b_hh).reshape(4, h)
    # PyTorch gate order is (i, f, g, o); the forget gate (index 1) is dead
    # because c0 == 0, so only i, g, o are packed.
    w_cols, b_cols = [], []
    for j in (0, 2, 3):
        wj = jnp.pad(w_ih[j * h:(j + 1) * h, :].T, ((0, 0), (0, HPAD - h)))
        w_cols.append(wj)
        b_cols.append(jnp.pad(b_sum[j], (0, HPAD - h)))
    w_packed = jnp.concatenate(w_cols, axis=1).astype(jnp.bfloat16)  # (D, 3*128)

    bias_row = jnp.concatenate(b_cols)                               # (3*128,)
    fc_row = jnp.zeros((3 * HPAD,), jnp.float32)
    fc_row = fc_row.at[:h].set(w_fc.reshape(h))
    fc_row = fc_row.at[HPAD].set(b_fc.reshape(()))
    aux = jnp.stack([bias_row, fc_row], axis=0).astype(jnp.float32)  # (2, 3*128)
    return w_packed, aux


if __name__ == "__main__":
    key = jax.random.PRNGKey(0)
    B, D, H = 8, 16, 50          # batch, input_size, hidden_size (module default 50)
    ks = jax.random.split(key, 7)
    bound = 1.0 / jnp.sqrt(jnp.float32(H))

    # Deterministic synthetic parameters, PyTorch nn.LSTM / nn.Linear shapes.
    w_ih = jax.random.uniform(ks[0], (4 * H, D), jnp.float32, -bound, bound)
    w_hh = jax.random.uniform(ks[1], (4 * H, H), jnp.float32, -bound, bound)  # unused: h0 == 0
    b_ih = jax.random.uniform(ks[2], (4 * H,), jnp.float32, -bound, bound)
    b_hh = jax.random.uniform(ks[3], (4 * H,), jnp.float32, -bound, bound)
    w_fc = jax.random.uniform(ks[4], (1, H), jnp.float32, -bound, bound)
    b_fc = jax.random.uniform(ks[5], (1,), jnp.float32, -bound, bound)
    x = jax.random.normal(ks[6], (B, D), jnp.float32)

    # Packing runs once; its outputs are reused (not re-traced per forward).
    w_packed, aux = pack_params(w_ih, b_ih, b_hh, w_fc, b_fc)
    w_packed = jax.block_until_ready(w_packed)
    aux = jax.block_until_ready(aux)

    out = lstm_regressor_forward(x, w_packed, aux)
    out = jax.block_until_ready(out)
    assert out.shape == (B, 1)

    # Reference 1: same math/precision as the kernel (bf16 MXU operands, f32
    # accumulate + elementwise), built from the UN-packed PyTorch weights so it
    # also validates the packing.  Tight tolerance.
    b_sum = b_ih + b_hh
    x_bf16 = x.astype(jnp.bfloat16)

    def gate_pre(j):
        wj = w_ih[j * H:(j + 1) * H, :].T.astype(jnp.bfloat16)   # (D, H)
        return (jnp.dot(x_bf16, wj, preferred_element_type=jnp.float32)
                + b_sum[j * H:(j + 1) * H])

    c_m = jax.nn.sigmoid(gate_pre(0)) * jnp.tanh(gate_pre(2))
    h_m = jax.nn.sigmoid(gate_pre(3)) * jnp.tanh(c_m)
    ref_matched = jnp.sum(h_m * w_fc.reshape(1, H), axis=-1, keepdims=True) + b_fc

    # Reference 2: original full-f32 module math; looser tolerance covers the
    # bf16 quantization of the MXU operands.
    gates_f32 = x @ w_ih.T + b_ih + b_hh
    gi_r, gf_r, gg_r, go_r = jnp.split(gates_f32, 4, axis=1)
    c_r = jax.nn.sigmoid(gi_r) * jnp.tanh(gg_r)
    h_r = jax.nn.sigmoid(go_r) * jnp.tanh(c_r)
    ref_f32 = h_r @ w_fc.T + b_fc

    assert jnp.allclose(out, ref_matched, atol=1e-4, rtol=1e-4)
    assert jnp.allclose(out, ref_f32, atol=1e-2, rtol=1e-2)
    print("KERNEL_OK")
</pallas_src>

<mosaic_0001>
module attributes {stable_mosaic.version = 11 : i64} {
  func.func @lstm_regressor_kernel(%arg0: memref<8x16xf32, #tpu.memory_space<vmem>>, %arg1: memref<16x384xbf16, #tpu.memory_space<vmem>>, %arg2: memref<2x384xf32, #tpu.memory_space<vmem>>, %arg3: memref<8x1xf32, #tpu.memory_space<vmem>>) attributes {dimension_semantics = [], scalar_prefetch = 0 : i64, scratch_operands = 0 : i64, tpu.core_type = #tpu.core_type<tc>} {
    %c0 = arith.constant 0 : index
    %c0_0 = arith.constant 0 : index
    %0 = vector.load %arg0[%c0, %c0_0] : memref<8x16xf32, #tpu.memory_space<vmem>>, vector<8x16xf32>
    %1 = arith.truncf %0 : vector<8x16xf32> to vector<8x16xbf16>
    %c0_1 = arith.constant 0 : index
    %c0_2 = arith.constant 0 : index
    %2 = vector.load %arg1[%c0_1, %c0_2] : memref<16x384xbf16, #tpu.memory_space<vmem>>, vector<16x384xbf16>
    %cst = arith.constant dense<0.000000e+00> : vector<8x384xf32>
    %3 = tpu.matmul %1, %2, %cst {dimension_numbers = #tpu.dot_dimension_numbers<[1], [0], [0], [1], [0, 0, 1, 1], [], []>} : vector<8x16xbf16>, vector<16x384xbf16>, vector<8x384xf32> -> vector<8x384xf32>
    %c0_3 = arith.constant 0 : index
    %c0_4 = arith.constant 0 : index
    %4 = vector.load %arg2[%c0_3, %c0_4] : memref<2x384xf32, #tpu.memory_space<vmem>>, vector<1x384xf32>
    %5 = vector.broadcast %4 : vector<1x384xf32> to vector<8x384xf32>
    %6 = arith.addf %3, %5 : vector<8x384xf32>
    %7 = vector.extract_strided_slice %6 {offsets = [0, 0], sizes = [8, 128], strides = [1, 1]} : vector<8x384xf32> to vector<8x128xf32>
    %8 = arith.negf %7 : vector<8x128xf32>
    %9 = math.exp %8 : vector<8x128xf32>
    %cst_5 = arith.constant 1.000000e+00 : f32
    %10 = vector.broadcast %cst_5 : f32 to vector<8x128xf32>
    %11 = arith.addf %10, %9 : vector<8x128xf32>
    %12 = arith.divf %10, %11 : vector<8x128xf32>
    %13 = vector.extract_strided_slice %6 {offsets = [0, 128], sizes = [8, 128], strides = [1, 1]} : vector<8x384xf32> to vector<8x128xf32>
    %14 = math.tanh %13 : vector<8x128xf32>
    %15 = vector.extract_strided_slice %6 {offsets = [0, 256], sizes = [8, 128], strides = [1, 1]} : vector<8x384xf32> to vector<8x128xf32>
    %16 = arith.negf %15 : vector<8x128xf32>
    %17 = math.exp %16 : vector<8x128xf32>
    %cst_6 = arith.constant 1.000000e+00 : f32
    %18 = vector.broadcast %cst_6 : f32 to vector<8x128xf32>
    %19 = arith.addf %18, %17 : vector<8x128xf32>
    %20 = arith.divf %18, %19 : vector<8x128xf32>
    %21 = arith.mulf %12, %14 : vector<8x128xf32>
    %22 = math.tanh %21 : vector<8x128xf32>
    %23 = arith.mulf %20, %22 : vector<8x128xf32>
    %c1 = arith.constant 1 : index
    %c0_7 = arith.constant 0 : index
    %24 = vector.load %arg2[%c1, %c0_7] : memref<2x384xf32, #tpu.memory_space<vmem>>, vector<1x128xf32>
    %c1_8 = arith.constant 1 : index
    %c128 = arith.constant 128 : index
    %25 = vector.load %arg2[%c1_8, %c128] : memref<2x384xf32, #tpu.memory_space<vmem>>, vector<1x1xf32>
    %26 = vector.broadcast %24 : vector<1x128xf32> to vector<8x128xf32>
    %27 = arith.mulf %23, %26 : vector<8x128xf32>
    %cst_9 = arith.constant dense<0.000000e+00> : vector<8xf32>
    %28 = vector.multi_reduction <add>, %27, %cst_9 [1] : vector<8x128xf32> to vector<8xf32>
    %29 = vector.shape_cast %28 : vector<8xf32> to vector<8x1xf32>
    %30 = vector.broadcast %25 : vector<1x1xf32> to vector<8x1xf32>
    %31 = arith.addf %29, %30 : vector<8x1xf32>
    %c0_10 = arith.constant 0 : index
    %c0_11 = arith.constant 0 : index
    %32 = vector.load %arg3[%c0_10, %c0_11] : memref<8x1xf32, #tpu.memory_space<vmem>>, vector<8x1xf32>
    tpu.vector_store %arg3[%c0_10, %c0_11], %31 {strides = array<i32>} : memref<8x1xf32, #tpu.memory_space<vmem>>, vector<8x1xf32>,
    return
  }
}

</mosaic_0001>

<llo_original>
// kernel: tpu_custom_call.1
$region0: #{tpu_custom_call.1}
  #allocation0 [shape = 'u32[]', space=smem, size = 0x4, offset = 0x4, fixed_abs, tag = 'smem constant byte address 0x4 - core index']
  #allocation1 [shape = 'u32[144,128]{1,0:T(1,128)}', space=vmem, size = 0x12000, scoped, tag = 'internal scratch']
  %s0 = inlined_call_operand.hbm [shape: f32[8,16], index: 0, kind: input, shape index: {}]
  %s1 = inlined_call_operand.hbm [shape: bf16[16,384], index: 1, kind: input, shape index: {}]
  %s2 = inlined_call_operand.hbm [shape: f32[2,384], index: 2, kind: input, shape index: {}]
  %s3 = inlined_call_operand.vmem [shape: f32[8,1], index: 3, kind: output, shape index: {}]
  %s4 = sld [smem:[#allocation0]]
  $region34: #{tpu_custom_call.1} parent=0
    _
  %s6 = ssub.s32 1, %s4
  %s7 = scalar_select 0, %s6, %s4
  $region1: #{tpu_custom_call.1} parent=0
    #allocation2 [shape = 'u8[4096]{0}', space=vmem, size = 0x1000, scoped, tag = 'input window, operand 0, single buffered']
    #allocation3 [shape = 's32[1]{0}', space=sflag, size = 0x4, scoped, tag = 'scoped memory for tpu_custom_call.1']
    #allocation4 [shape = 'u8[12288]{0}', space=vmem, size = 0x3000, scoped, tag = 'input window, operand 1, single buffered']
    #allocation5 [shape = 's32[1]{0}', space=sflag, size = 0x4, scoped, tag = 'scoped memory for tpu_custom_call.1']
    #allocation6 [shape = 'u8[3072]{0}', space=vmem, size = 0xc00, scoped, tag = 'input window, operand 2, single buffered']
    %8 = vsyncpa [#allocation3], 0
    %9 = vsyncpa [#allocation5], 0
    // Predicated region
    $region2: #{tpu_custom_call.1} parent=1 // pred_check
      _
    $region3: #{tpu_custom_call.1} parent=1 // pred_check_branch
      %11 = sbr.rel (0) target = $region5
    $region4: #{tpu_custom_call.1} parent=1 // pred_region
      %s13 = ssub.s32 128, 128
      %14 = vsyncadd [#allocation3], %s13
      %s16 = sshll.u32 [#allocation2], 4
      %s17 = int_to_ptr.vmem [resolvable:$true] %s16
      %19 = dma.hbm_to_vmem [thread:$0]  %s0, 128, %s17, [#allocation3]
    $region5: #{tpu_custom_call.1} parent=1 // pred_fallthru
      _
    // Predicated region
    $region6: #{tpu_custom_call.1} parent=1 // pred_check
      _
    $region7: #{tpu_custom_call.1} parent=1 // pred_check_branch
      %21 = sbr.rel (0) target = $region9
    $region8: #{tpu_custom_call.1} parent=1 // pred_region
      %s23 = ssub.s32 384, 384
      %24 = vsyncadd [#allocation5], %s23
      %s25 = sshll.u32 [#allocation4], 4
      %s26 = int_to_ptr.vmem [resolvable:$true] %s25
      %31 = dma.hbm_to_vmem [thread:$0]  %s1, 384, %s26, [#allocation5], 192, 192, 12
    $region9: #{tpu_custom_call.1} parent=1 // pred_fallthru
      _
    // Predicated region
    $region10: #{tpu_custom_call.1} parent=1 // pred_check
      _
    $region11: #{tpu_custom_call.1} parent=1 // pred_check_branch
      %33 = sbr.rel (0) target = $region13
    $region12: #{tpu_custom_call.1} parent=1 // pred_region
      %s35 = ssub.s32 96, 96
      %36 = vsyncadd [#allocation5], %s35
      %s38 = sshll.u32 [#allocation6], 4
      %s39 = int_to_ptr.vmem [resolvable:$true] %s38
      %41 = dma.hbm_to_vmem [thread:$0]  %s2, 96, %s39, [#allocation5]
    $region13: #{tpu_custom_call.1} parent=1 // pred_fallthru
      _
    // Predicated region
    $region14: #{tpu_custom_call.1} parent=1 // pred_check
      _
    $region15: #{tpu_custom_call.1} parent=1 // pred_check_branch
      %43 = sbr.rel (0) target = $region17
    $region16: #{tpu_custom_call.1} parent=1 // pred_region
      %44 = dma.done [#allocation3], 128
    $region17: #{tpu_custom_call.1} parent=1 // pred_fallthru
      _
    // Predicated region
    $region18: #{tpu_custom_call.1} parent=1 // pred_check
      _
    $region19: #{tpu_custom_call.1} parent=1 // pred_check_branch
      %46 = sbr.rel (0) target = $region21
    $region20: #{tpu_custom_call.1} parent=1 // pred_region
      %47 = dma.done [#allocation5], 384
    $region21: #{tpu_custom_call.1} parent=1 // pred_fallthru
      _
    // Predicated region
    $region22: #{tpu_custom_call.1} parent=1 // pred_check
      _
    $region23: #{tpu_custom_call.1} parent=1 // pred_check_branch
      %49 = sbr.rel (0) target = $region25
    $region24: #{tpu_custom_call.1} parent=1 // pred_region
      %50 = dma.done [#allocation5], 96
    $region25: #{tpu_custom_call.1} parent=1 // pred_fallthru
      _
    %v52 = vld [vmem:[#allocation2] sm:$0xff]
    %v53 = vpack.c.bf16 %v52, %v52
    %v54 = vld [vmem:[#allocation4] sm:$0xff]
    %v55 = vld [vmem:[#allocation4 + $0x8] sm:$0xf]
    %v56 = vld [vmem:[#allocation4 + $0xc] sm:$0xff]
    %v57 = vld [vmem:[#allocation4 + $0x14] sm:$0xf]
    %v58 = vld [vmem:[#allocation6] ss:$2 sm:$0x7]
    %v60 = vlaneseq
    %v61 = vshrl.u32 %v60, 7
    %v62 = vsub.s32 0, %v61
    %v63 = vrot.slane %v58, %v62
    %v64 = vlaneseq
    %v65 = vshrl.u32 %v64, 7
    %v66 = vsub.s32 1, %v65
    %v67 = vrot.slane %v58, %v66
    %v68 = vlaneseq
    %v69 = vshrl.u32 %v68, 7
    %v70 = vsub.s32 2, %v69
    %v71 = vrot.slane %v58, %v70
    %v79 = vunpack.c.l.b16 %v54
    %v80 = vunpack.c.h.b16 %v54
    %v81 = vunpack.c.l.b16 %v55
    %v82 = vunpack.c.l.b16 %v56
    %v83 = vunpack.c.h.b16 %v56
    %v84 = vunpack.c.l.b16 %v57
    %v85 = vpack.c.b16 %v82, %v79
    %v86 = vpack.c.b16 %v83, %v80
    %v87 = vpack.c.b16 %v84, %v81
    %vm91 = vcmask 130048
    %v93 = vsel %vm91, %v53, 0
    %95 = vmatprep.subr.bf16.mxu0 0
    %96 = vmatpush1.bf16.msra.mxu0 0
    %97 = vmatprep.subr.bf16.mxu0 0
    %98 = vmatpush1.bf16.msra.mxu0 0
    %99 = vmatprep.subr.bf16.mxu0 0
    %100 = vmatpush1.bf16.msra.mxu0 0
    %101 = vmatprep.subr.bf16.mxu0 0
    %102 = vmatpush1.bf16.msra.mxu0 0
    %103 = vmatprep.subr.bf16.mxu0 0
    %104 = vmatpush1.bf16.msra.mxu0 0
    %105 = vmatprep.subr.bf16.mxu0 0
    %106 = vmatpush1.bf16.msra.mxu0 0
    %107 = vmatprep.subr.bf16.mxu0 0
    %108 = vmatpush1.bf16.msra.mxu0 0
    %109 = vmatprep.subr.bf16.mxu0 %v86
    %110 = vmatpush1.bf16.msra.mxu0 %v85
    %111 = vmatprep.subr.bf16.mxu0 0
    %112 = vmatpush2.bf16.msra.mxu0 0
    %113 = vmatprep.subr.bf16.mxu0 0
    %114 = vmatpush2.bf16.msra.mxu0 0
    %115 = vmatprep.subr.bf16.mxu0 0
    %116 = vmatpush2.bf16.msra.mxu0 0
    %117 = vmatprep.subr.bf16.mxu0 0
    %118 = vmatpush2.bf16.msra.mxu0 0
    %119 = vmatprep.subr.bf16.mxu0 0
    %120 = vmatpush2.bf16.msra.mxu0 0
    %121 = vmatprep.subr.bf16.mxu0 0
    %122 = vmatpush2.bf16.msra.mxu0 0
    %123 = vmatprep.subr.bf16.mxu0 0
    %124 = vmatpush2.bf16.msra.mxu0 0
    %125 = vmatprep.subr.bf16.mxu0 0
    %126 = vmatpush2.bf16.msra.mxu0 0
    %127 = vmatprep.mubr.bf16.mxu0 0
    %128 = vmatmul.mubr.bf16.gmra.mxu0 %v93
    %v129 = vpop.f32.mrf.mxu0
    %v130 = vadd.f32 %v63, %v129
    %v131 = vpop.f32.mrf.mxu0
    %v132 = vadd.f32 %v67, %v131
    %v133 = vpop.f32.mrf.mxu0
    %v134 = vpop.f32.mrf.mxu0
    %135 = vdwg.mxu0
    %136 = vmatprep.subr.bf16.mxu0 0
    %137 = vmatpush1.bf16.msra.mxu0 0
    %138 = vmatprep.subr.bf16.mxu0 0
    %139 = vmatpush1.bf16.msra.mxu0 0
    %140 = vmatprep.subr.bf16.mxu0 0
    %141 = vmatpush1.bf16.msra.mxu0 0
    %142 = vmatprep.subr.bf16.mxu0 0
    %143 = vmatpush1.bf16.msra.mxu0 0
    %144 = vmatprep.subr.bf16.mxu0 0
    %145 = vmatpush1.bf16.msra.mxu0 0
    %146 = vmatprep.subr.bf16.mxu0 0
    %147 = vmatpush1.bf16.msra.mxu0 0
    %148 = vmatprep.subr.bf16.mxu0 0
    %149 = vmatpush1.bf16.msra.mxu0 0
    %150 = vmatprep.subr.bf16.mxu0 0
    %151 = vmatpush1.bf16.msra.mxu0 %v87
    %152 = vmatprep.subr.bf16.mxu0 0
    %153 = vmatpush2.bf16.msra.mxu0 0
    %154 = vmatprep.subr.bf16.mxu0 0
    %155 = vmatpush2.bf16.msra.mxu0 0
    %156 = vmatprep.subr.bf16.mxu0 0
    %157 = vmatpush2.bf16.msra.mxu0 0
    %158 = vmatprep.subr.bf16.mxu0 0
    %159 = vmatpush2.bf16.msra.mxu0 0
    %160 = vmatprep.subr.bf16.mxu0 0
    %161 = vmatpush2.bf16.msra.mxu0 0
    %162 = vmatprep.subr.bf16.mxu0 0
    %163 = vmatpush2.bf16.msra.mxu0 0
    %164 = vmatprep.subr.bf16.mxu0 0
    %165 = vmatpush2.bf16.msra.mxu0 0
    %166 = vmatprep.subr.bf16.mxu0 0
    %167 = vmatpush2.bf16.msra.mxu0 0
    %168 = vmatprep.mubr.bf16.mxu0 0
    %169 = vmatmul.mubr.bf16.gmra.mxu0 %v93
    %v170 = vpop.f32.mrf.mxu0
    %v171 = vadd.f32 %v71, %v170
    %v172 = vpop.f32.mrf.mxu0
    %v173 = vpop.f32.mrf.mxu0
    %v174 = vpop.f32.mrf.mxu0
    %175 = vdwg.mxu0
    %v176 = vxor.u32 %v130, 2147483648
    %v177 = vmul.f32 %v176, 1.442695
    %v178 = vpow.pop %v177
    %v179 = vadd.f32 %v178, 1.0
    %v180 = vrcp.pop %v179
    %v181 = vmul.f32 1.0, %v180
    %v182 = vtanh.pop %v132
    %v183 = vxor.u32 %v171, 2147483648
    %v184 = vmul.f32 %v183, 1.442695
    %v185 = vpow.pop %v184
    %v186 = vadd.f32 %v185, 1.0
    %v187 = vrcp.pop %v186
    %v188 = vmul.f32 1.0, %v187
    %v189 = vmul.f32 %v181, %v182
    %v190 = vtanh.pop %v189
    %v191 = vmul.f32 %v188, %v190
    %v192 = vld [vmem:[#allocation6 + $0x1] sm:$0x1]
    %v193 = vld [vmem:[#allocation6 + $0x3] sm:$0x1]
    %v194 = vlaneseq
    %v195 = vshrl.u32 %v194, 7
    %v196 = vsub.s32 0, %v195
    %v197 = vrot.slane %v192, %v196
    %v198 = vmul.f32 %v191, %v197
    %199 = vadd.xlane.f32.xlu0 %v198
    %v200 = vpop.xlane.xlu0 %199
    %v201 = vlaneseq
    %v202 = vshrl.u32 %v201, 7
    %v203 = vsub.s32 0, %v202
    %v204 = vrot.slane %v193, %v203
    %v205 = vadd.f32 %v200, %v204
    %vm206 = vcmask 7168
    %207 = vst.msk [vmem:[%s3] sm:$0xff] %vm206, %v205
    // Predicated region
    $region26: #{tpu_custom_call.1} parent=1 // pred_check
      _
    $region27: #{tpu_custom_call.1} parent=1 // pred_check_branch
      %209 = sbr.rel (0) target = $region29
    $region28: #{tpu_custom_call.1} parent=1 // pred_region
      _
    $region29: #{tpu_custom_call.1} parent=1 // pred_fallthru
      _
    // Predicated region
    $region30: #{tpu_custom_call.1} parent=1 // pred_check
      _
    $region31: #{tpu_custom_call.1} parent=1 // pred_check_branch
      %211 = sbr.rel (0) target = $region33
    $region32: #{tpu_custom_call.1} parent=1 // pred_region
      _
    $region33: #{tpu_custom_call.1} parent=1 // pred_fallthru
      _
    %212 = vsyncpa [#allocation3], 1
    %213 = vsyncpa [#allocation5], 1

</llo_original>
